<compile_context>
chip_gen: v7x
topology: tpu7x:2x2x1
jax: 0.10.0
libtpu: 0.0.40
codegen_flags: <defaults>
</compile_context>

<pallas_src>
import jax
import jax.numpy as jnp
from jax.experimental import pallas as pl
from jax.experimental.pallas import tpu as pltpu

NUM_INTENTS = 60           # len(MASSIVE_DATASET_INTENTS)
OUT_PAD = 128              # lane-dense padded output width (next multiple of 128)
BN_EPS = 1e-5


def _round_up(n, m):
    return ((n + m - 1) // m) * m


def _default_vmem_limit():
    """Per-generation scoped-VMEM budget: ~3/4 of physical, capped at 64 MiB.
    v5e/v6e (128 MiB physical) -> 64 MiB; v7x (64 MiB physical) -> 48 MiB."""
    try:
        cap = int(pltpu.get_tpu_info().vmem_capacity_bytes)
    except Exception:
        cap = 64 << 20     # conservative fallback
    return min((cap * 3) // 4, 64 << 20)


# ----------------------------------------------------------------------------
# Kernel
# ----------------------------------------------------------------------------
def _mlp_softmax_kernel(x_ref, w1_ref, b1_ref, w2_ref, b2_ref, w3_ref, b3_ref,
                        out_ref):
    # --- Layer 1: folded Linear+BatchNorm -> ReLU (bf16 MXU operands, f32 acc) ---
    h = jnp.dot(x_ref[...], w1_ref[...],
                preferred_element_type=jnp.float32) + b1_ref[...]
    h = jnp.maximum(h, 0.0)
    # TODO(synk): Dropout is identity in eval mode; training-mode dropout would
    # use pltpu.prng_seed / pltpu.prng_random_bits.

    # --- Layer 2: folded Linear+BatchNorm -> ReLU ---
    h = jnp.dot(h.astype(jnp.bfloat16), w2_ref[...],
                preferred_element_type=jnp.float32) + b2_ref[...]
    h = jnp.maximum(h, 0.0)

    # --- Head: Linear -> masked softmax over the lane-padded intent axis ---
    logits = jnp.dot(h.astype(jnp.bfloat16), w3_ref[...],
                     preferred_element_type=jnp.float32) + b3_ref[...]
    col = jax.lax.broadcasted_iota(jnp.int32, logits.shape, 1)
    valid = col < NUM_INTENTS
    # Max over the real 60 columns only (padded lanes pinned to a finite -1e9).
    m = jnp.max(jnp.where(valid, logits, jnp.float32(-1e9)),
                axis=-1, keepdims=True)
    # Padded lanes are forced to exactly 0 before the sum, so the softmax over
    # 128 lanes equals the softmax over the real 60 and rows sum to 1 exactly
    # (up to f32 rounding).  Exact divide (no approx reciprocal).
    e = jnp.where(valid, jnp.exp(logits - m), 0.0)
    denom = jnp.sum(e, axis=-1, keepdims=True)
    out_ref[...] = (e * (1.0 / denom)).astype(out_ref.dtype)


# ----------------------------------------------------------------------------
# Host-side parameter folding (BN fold + head lane-padding + bf16 weights)
# ----------------------------------------------------------------------------
def fold_params(params):
    """Fold eval-mode BatchNorm into the Linear weights/biases and pad the head
    to OUT_PAD lanes with ZERO columns (the kernel masks them explicitly).
    Matmul weights are cast to bf16; biases stay f32."""
    s1 = params["g1"] / jnp.sqrt(params["v1"] + BN_EPS)          # (1, h1)
    w1 = (params["w1"] * s1).astype(jnp.bfloat16)                # per-out-col scale
    b1 = ((params["b1"] - params["m1"]) * s1 + params["beta1"]).astype(jnp.float32)

    s2 = params["g2"] / jnp.sqrt(params["v2"] + BN_EPS)
    w2 = (params["w2"] * s2).astype(jnp.bfloat16)
    b2 = ((params["b2"] - params["m2"]) * s2 + params["beta2"]).astype(jnp.float32)

    w3 = jnp.zeros((params["w3"].shape[0], OUT_PAD), jnp.float32)
    w3 = w3.at[:, :NUM_INTENTS].set(params["w3"]).astype(jnp.bfloat16)
    b3 = jnp.zeros((1, OUT_PAD), jnp.float32)
    b3 = b3.at[:, :NUM_INTENTS].set(params["b3"])

    return dict(w1=w1, b1=b1, w2=w2, b2=b2, w3=w3, b3=b3)


# ----------------------------------------------------------------------------
# Wrapper
# ----------------------------------------------------------------------------
def polbert_intent_classifier(x, folded, *, block_b=1024, out_dtype=jnp.float32,
                              vmem_limit_bytes=None):
    """x: (B, hidden_size) float32; folded: output of fold_params.
    Returns (B, NUM_INTENTS) softmax probabilities in out_dtype."""
    B, H = x.shape
    w1, b1, w2, b2, w3, b3 = (folded[k] for k in ("w1", "b1", "w2", "b2", "w3", "b3"))
    h1, h2 = w1.shape[1], w2.shape[1]

    if vmem_limit_bytes is None:
        vmem_limit_bytes = _default_vmem_limit()

    # Stream the input in bf16: halves HBM read traffic and the x VMEM tile.
    x = x.astype(jnp.bfloat16)
    out_isz = jnp.dtype(out_dtype).itemsize
    weight_bytes = sum(int(p.size) * p.dtype.itemsize for p in (w1, b1, w2, b2, w3, b3))

    def footprint(tb):
        # Double-buffered x (bf16) + out tiles, double-buffered resident
        # weights, plus f32 intermediates / bf16 casts / softmax temps.
        stream = 2 * tb * (H * 2 + OUT_PAD * out_isz)
        inter = tb * (6 * h1 + 6 * h2 + 12 * OUT_PAD)
        return 2 * weight_bytes + stream + inter

    # --- Batch tile selection -------------------------------------------------
    B8 = _round_up(B, 8)
    if B8 <= 16:
        TB = B8                                     # single full-dim block
    else:
        Bq = _round_up(B, 16)                       # bf16-friendly sublane multiple
        TB = min(_round_up(block_b, 16), Bq)
        # >= 2 grid steps so the "parallel" axis can shard over v7x's 2 TCs.
        TB = min(TB, _round_up(-(-Bq // 2), 16))
        # Shrink until the honest footprint fits the scoped-VMEM budget.
        while TB > 16 and footprint(TB) > vmem_limit_bytes:
            TB = max(16, _round_up(TB // 2, 16))
        # Prefer a tile that divides round_up(B, 8/16) to avoid a big pad copy.
        if Bq % TB != 0:
            d = TB
            while d > 16 and Bq % d != 0:
                d -= 16
            if Bq % d == 0 and 2 * d >= TB:
                TB = d

    B_pad = _round_up(B, TB)
    if B_pad != B:
        x = jnp.pad(x, ((0, B_pad - B), (0, 0)))

    grid = (B_pad // TB,)

    def const(shape):
        # Weight/bias blocks: full array, constant index map -> VMEM-resident.
        return pl.BlockSpec(shape, lambda i: (0,) * len(shape))

    out = pl.pallas_call(
        _mlp_softmax_kernel,
        out_shape=jax.ShapeDtypeStruct((B_pad, OUT_PAD), out_dtype),
        grid=grid,
        in_specs=[
            # Streamed / double-buffered bf16 input tile (depth 2 is enough;
            # bigger TB beats deeper buffering per the pipelining data).
            pl.BlockSpec((TB, H), lambda i: (i, 0)),
            const(w1.shape), const(b1.shape),
            const(w2.shape), const(b2.shape),
            const(w3.shape), const(b3.shape),
        ],
        out_specs=pl.BlockSpec((TB, OUT_PAD), lambda i: (i, 0)),
        compiler_params=pltpu.CompilerParams(
            dimension_semantics=("parallel",),   # shard batch tiles over 2 TCs on v7x
            vmem_limit_bytes=int(vmem_limit_bytes),
        ),
    )(x, w1, b1, w2, b2, w3, b3)

    # Consumers that only need argmax could take the padded (B_pad, 128) buffer
    # directly and skip this slice copy.
    return out[:B, :NUM_INTENTS]


# ----------------------------------------------------------------------------
# Parameters + references
# ----------------------------------------------------------------------------
def init_params(hidden_size, key):
    """Deterministic synthetic parameters matching the PyTorch module's shapes.
    Linear weights are stored transposed vs. PyTorch, i.e. (in, out)."""
    h1 = hidden_size // 2
    h2 = h1 // 2
    keys = jax.random.split(key, 8)

    def lin(k, fan_in, fan_out):
        bound = 1.0 / jnp.sqrt(fan_in)
        kw, kb = jax.random.split(k)
        w = jax.random.uniform(kw, (fan_in, fan_out), jnp.float32, -bound, bound)
        b = jax.random.uniform(kb, (1, fan_out), jnp.float32, -bound, bound)
        return w, b

    w1, b1 = lin(keys[0], hidden_size, h1)
    w2, b2 = lin(keys[1], h1, h2)
    w3, b3 = lin(keys[2], h2, NUM_INTENTS)

    # BatchNorm1d eval-mode parameters: gamma, beta, running_mean, running_var.
    g1 = jnp.ones((1, h1), jnp.float32)
    beta1 = jnp.zeros((1, h1), jnp.float32)
    m1 = 0.1 * jax.random.normal(keys[3], (1, h1), jnp.float32)
    v1 = 1.0 + 0.1 * jax.random.uniform(keys[4], (1, h1), jnp.float32)

    g2 = jnp.ones((1, h2), jnp.float32)
    beta2 = jnp.zeros((1, h2), jnp.float32)
    m2 = 0.1 * jax.random.normal(keys[5], (1, h2), jnp.float32)
    v2 = 1.0 + 0.1 * jax.random.uniform(keys[6], (1, h2), jnp.float32)

    return dict(
        w1=w1, b1=b1, g1=g1, beta1=beta1, m1=m1, v1=v1,
        w2=w2, b2=b2, g2=g2, beta2=beta2, m2=m2, v2=v2,
        w3=w3, b3=b3,
    )


def reference_forward(x, p):
    """Exact f32 reference of the PyTorch module (eval mode)."""
    h = x @ p["w1"] + p["b1"]
    h = (h - p["m1"]) / jnp.sqrt(p["v1"] + BN_EPS) * p["g1"] + p["beta1"]
    h = jnp.maximum(h, 0.0)
    h = h @ p["w2"] + p["b2"]
    h = (h - p["m2"]) / jnp.sqrt(p["v2"] + BN_EPS) * p["g2"] + p["beta2"]
    h = jnp.maximum(h, 0.0)
    logits = h @ p["w3"] + p["b3"]
    return jax.nn.softmax(logits, axis=-1)


def reference_forward_folded(x, f):
    """Reference using the same folded / bf16-matmul / padded-head formulation."""
    h = jnp.dot(x.astype(jnp.bfloat16), f["w1"],
                preferred_element_type=jnp.float32) + f["b1"]
    h = jnp.maximum(h, 0.0)
    h = jnp.dot(h.astype(jnp.bfloat16), f["w2"],
                preferred_element_type=jnp.float32) + f["b2"]
    h = jnp.maximum(h, 0.0)
    logits = jnp.dot(h.astype(jnp.bfloat16), f["w3"],
                     preferred_element_type=jnp.float32) + f["b3"]
    return jax.nn.softmax(logits[:, :NUM_INTENTS], axis=-1)


if __name__ == "__main__":
    hidden_size = 32
    batch = 8

    key = jax.random.PRNGKey(0)
    kx, kp = jax.random.split(key)
    x = jax.random.normal(kx, (batch, hidden_size), jnp.float32)
    params = init_params(hidden_size, kp)
    folded = fold_params(params)

    out = polbert_intent_classifier(x, folded)
    out = jax.block_until_ready(out)

    assert out.shape == (batch, NUM_INTENTS)
    # Rows are exact probabilities now (exact divide, masked padded lanes).
    assert jnp.allclose(jnp.sum(out, axis=-1), 1.0, atol=2e-3)

    # Tight check vs a reference using the same folded bf16-matmul formulation.
    ref_bf16 = reference_forward_folded(x, folded)
    assert jnp.allclose(out, ref_bf16, atol=2e-3, rtol=2e-3)

    # Loose check vs the exact f32 PyTorch-equivalent forward (bf16 MXU error).
    ref_f32 = reference_forward(x, params)
    assert jnp.allclose(out, ref_f32, atol=2e-2, rtol=2e-2)

    print("KERNEL_OK")
</pallas_src>

<mosaic_0001>
module attributes {stable_mosaic.version = 11 : i64} {
  func.func @_mlp_softmax_kernel(%arg0: i32, %arg1: memref<8x32xbf16, #tpu.memory_space<vmem>>, %arg2: memref<32x16xbf16, #tpu.memory_space<vmem>>, %arg3: memref<1x16xf32, #tpu.memory_space<vmem>>, %arg4: memref<16x8xbf16, #tpu.memory_space<vmem>>, %arg5: memref<1x8xf32, #tpu.memory_space<vmem>>, %arg6: memref<8x128xbf16, #tpu.memory_space<vmem>>, %arg7: memref<1x128xf32, #tpu.memory_space<vmem>>, %arg8: memref<8x128xf32, #tpu.memory_space<vmem>>) attributes {dimension_semantics = [#tpu.dimension_semantics<parallel>], iteration_bounds = array<i64: 1>, scalar_prefetch = 0 : i64, scratch_operands = 0 : i64, tpu.core_type = #tpu.core_type<tc>, window_params = [{transform_indices = @transform_0, window_bounds = array<i64: 8, 32>}, {pipeline_mode = #tpu.pipeline_mode<synchronous>, transform_indices = @transform_1, window_bounds = array<i64: 32, 16>}, {pipeline_mode = #tpu.pipeline_mode<synchronous>, transform_indices = @transform_2, window_bounds = array<i64: 1, 16>}, {pipeline_mode = #tpu.pipeline_mode<synchronous>, transform_indices = @transform_3, window_bounds = array<i64: 16, 8>}, {pipeline_mode = #tpu.pipeline_mode<synchronous>, transform_indices = @transform_4, window_bounds = array<i64: 1, 8>}, {pipeline_mode = #tpu.pipeline_mode<synchronous>, transform_indices = @transform_5, window_bounds = array<i64: 8, 128>}, {pipeline_mode = #tpu.pipeline_mode<synchronous>, transform_indices = @transform_6, window_bounds = array<i64: 1, 128>}, {transform_indices = @transform_7, window_bounds = array<i64: 8, 128>}]} {
    %c0 = arith.constant 0 : index
    %c0_0 = arith.constant 0 : index
    %0 = vector.load %arg1[%c0, %c0_0] : memref<8x32xbf16, #tpu.memory_space<vmem>>, vector<8x32xbf16>
    %c0_1 = arith.constant 0 : index
    %c0_2 = arith.constant 0 : index
    %1 = vector.load %arg2[%c0_1, %c0_2] : memref<32x16xbf16, #tpu.memory_space<vmem>>, vector<32x16xbf16>
    %cst = arith.constant dense<0.000000e+00> : vector<8x16xf32>
    %2 = tpu.matmul %0, %1, %cst {dimension_numbers = #tpu.dot_dimension_numbers<[1], [0], [0], [1], [0, 0, 1, 1], [], []>} : vector<8x32xbf16>, vector<32x16xbf16>, vector<8x16xf32> -> vector<8x16xf32>
    %c0_3 = arith.constant 0 : index
    %c0_4 = arith.constant 0 : index
    %3 = vector.load %arg3[%c0_3, %c0_4] : memref<1x16xf32, #tpu.memory_space<vmem>>, vector<1x16xf32>
    %4 = vector.broadcast %3 : vector<1x16xf32> to vector<8x16xf32>
    %5 = arith.addf %2, %4 : vector<8x16xf32>
    %cst_5 = arith.constant 0.000000e+00 : f32
    %6 = vector.broadcast %cst_5 : f32 to vector<8x16xf32>
    %7 = arith.maximumf %5, %6 : vector<8x16xf32>
    %8 = arith.truncf %7 : vector<8x16xf32> to vector<8x16xbf16>
    %c0_6 = arith.constant 0 : index
    %c0_7 = arith.constant 0 : index
    %9 = vector.load %arg4[%c0_6, %c0_7] : memref<16x8xbf16, #tpu.memory_space<vmem>>, vector<16x8xbf16>
    %cst_8 = arith.constant dense<0.000000e+00> : vector<8x8xf32>
    %10 = tpu.matmul %8, %9, %cst_8 {dimension_numbers = #tpu.dot_dimension_numbers<[1], [0], [0], [1], [0, 0, 1, 1], [], []>} : vector<8x16xbf16>, vector<16x8xbf16>, vector<8x8xf32> -> vector<8x8xf32>
    %c0_9 = arith.constant 0 : index
    %c0_10 = arith.constant 0 : index
    %11 = vector.load %arg5[%c0_9, %c0_10] : memref<1x8xf32, #tpu.memory_space<vmem>>, vector<1x8xf32>
    %12 = vector.broadcast %11 : vector<1x8xf32> to vector<8x8xf32>
    %13 = arith.addf %10, %12 : vector<8x8xf32>
    %cst_11 = arith.constant 0.000000e+00 : f32
    %14 = vector.broadcast %cst_11 : f32 to vector<8x8xf32>
    %15 = arith.maximumf %13, %14 : vector<8x8xf32>
    %16 = arith.truncf %15 : vector<8x8xf32> to vector<8x8xbf16>
    %c0_12 = arith.constant 0 : index
    %c0_13 = arith.constant 0 : index
    %17 = vector.load %arg6[%c0_12, %c0_13] : memref<8x128xbf16, #tpu.memory_space<vmem>>, vector<8x128xbf16>
    %cst_14 = arith.constant dense<0.000000e+00> : vector<8x128xf32>
    %18 = tpu.matmul %16, %17, %cst_14 {dimension_numbers = #tpu.dot_dimension_numbers<[1], [0], [0], [1], [0, 0, 1, 1], [], []>} : vector<8x8xbf16>, vector<8x128xbf16>, vector<8x128xf32> -> vector<8x128xf32>
    %c0_15 = arith.constant 0 : index
    %c0_16 = arith.constant 0 : index
    %19 = vector.load %arg7[%c0_15, %c0_16] : memref<1x128xf32, #tpu.memory_space<vmem>>, vector<1x128xf32>
    %20 = vector.broadcast %19 : vector<1x128xf32> to vector<8x128xf32>
    %21 = arith.addf %18, %20 : vector<8x128xf32>
    %22 = tpu.iota {dimensions = array<i32: 1>} : vector<8x128xi32>
    %c60_i32 = arith.constant 60 : i32
    %23 = vector.broadcast %c60_i32 : i32 to vector<8x128xi32>
    %24 = arith.cmpi slt, %22, %23 : vector<8x128xi32>
    %cst_17 = arith.constant -1.000000e+09 : f32
    %25 = vector.broadcast %cst_17 : f32 to vector<8x128xf32>
    %26 = arith.select %24, %21, %25 : vector<8x128xi1>, vector<8x128xf32>
    %cst_18 = arith.constant dense<0xFF800000> : vector<8xf32>
    %27 = vector.multi_reduction <maximumf>, %26, %cst_18 [1] : vector<8x128xf32> to vector<8xf32>
    %28 = vector.shape_cast %27 : vector<8xf32> to vector<8x1xf32>
    %29 = vector.broadcast %28 : vector<8x1xf32> to vector<8x128xf32>
    %30 = arith.subf %21, %29 : vector<8x128xf32>
    %31 = math.exp %30 : vector<8x128xf32>
    %cst_19 = arith.constant 0.000000e+00 : f32
    %32 = vector.broadcast %cst_19 : f32 to vector<8x128xf32>
    %33 = arith.select %24, %31, %32 : vector<8x128xi1>, vector<8x128xf32>
    %cst_20 = arith.constant dense<0.000000e+00> : vector<8xf32>
    %34 = vector.multi_reduction <add>, %33, %cst_20 [1] : vector<8x128xf32> to vector<8xf32>
    %35 = vector.shape_cast %34 : vector<8xf32> to vector<8x1xf32>
    %cst_21 = arith.constant 1.000000e+00 : f32
    %36 = vector.broadcast %cst_21 : f32 to vector<8x1xf32>
    %37 = arith.divf %36, %35 : vector<8x1xf32>
    %38 = vector.broadcast %37 : vector<8x1xf32> to vector<8x128xf32>
    %39 = arith.mulf %33, %38 : vector<8x128xf32>
    %c0_22 = arith.constant 0 : index
    %c0_23 = arith.constant 0 : index
    %40 = vector.load %arg8[%c0_22, %c0_23] : memref<8x128xf32, #tpu.memory_space<vmem>>, vector<8x128xf32>
    tpu.vector_store %arg8[%c0_22, %c0_23], %39 {strides = array<i32>} : memref<8x128xf32, #tpu.memory_space<vmem>>, vector<8x128xf32>,
    return
  }
  func.func @transform_0(%arg0: i32) -> (i32, i32) {
    %c0_i32 = arith.constant 0 : i32
    %c0_i32_0 = arith.constant 0 : i32
    return %arg0, %c0_i32 : i32, i32
  }
  func.func @transform_1(%arg0: i32) -> (i32, i32) {
    %c0_i32 = arith.constant 0 : i32
    %c0_i32_0 = arith.constant 0 : i32
    %c0_i32_1 = arith.constant 0 : i32
    return %c0_i32, %c0_i32_0 : i32, i32
  }
  func.func @transform_2(%arg0: i32) -> (i32, i32) {
    %c0_i32 = arith.constant 0 : i32
    %c0_i32_0 = arith.constant 0 : i32
    %c0_i32_1 = arith.constant 0 : i32
    return %c0_i32, %c0_i32_0 : i32, i32
  }
  func.func @transform_3(%arg0: i32) -> (i32, i32) {
    %c0_i32 = arith.constant 0 : i32
    %c0_i32_0 = arith.constant 0 : i32
    %c0_i32_1 = arith.constant 0 : i32
    return %c0_i32, %c0_i32_0 : i32, i32
  }
  func.func @transform_4(%arg0: i32) -> (i32, i32) {
    %c0_i32 = arith.constant 0 : i32
    %c0_i32_0 = arith.constant 0 : i32
    %c0_i32_1 = arith.constant 0 : i32
    return %c0_i32, %c0_i32_0 : i32, i32
  }
  func.func @transform_5(%arg0: i32) -> (i32, i32) {
    %c0_i32 = arith.constant 0 : i32
    %c0_i32_0 = arith.constant 0 : i32
    %c0_i32_1 = arith.constant 0 : i32
    return %c0_i32, %c0_i32_0 : i32, i32
  }
  func.func @transform_6(%arg0: i32) -> (i32, i32) {
    %c0_i32 = arith.constant 0 : i32
    %c0_i32_0 = arith.constant 0 : i32
    %c0_i32_1 = arith.constant 0 : i32
    return %c0_i32, %c0_i32_0 : i32, i32
  }
  func.func @transform_7(%arg0: i32) -> (i32, i32) {
    %c0_i32 = arith.constant 0 : i32
    %c0_i32_0 = arith.constant 0 : i32
    return %arg0, %c0_i32 : i32, i32
  }
}

</mosaic_0001>

<llo_original>
// kernel: tpu_custom_call.1
$region0: #{tpu_custom_call.1}
  #allocation0 [shape = 'u32[]', space=smem, size = 0x4, offset = 0x4, fixed_abs, tag = 'smem constant byte address 0x4 - core index']
  #allocation1 [shape = 'u32[144,128]{1,0:T(1,128)}', space=vmem, size = 0x12000, scoped, tag = 'internal scratch']
  %s0 = inlined_call_operand.vmem [shape: bf16[8,32], index: 0, kind: input, shape index: {}]
  %s1 = inlined_call_operand.vmem [shape: bf16[32,16], index: 1, kind: input, shape index: {}]
  %s2 = inlined_call_operand.vmem [shape: f32[1,16], index: 2, kind: input, shape index: {}]
  %s3 = inlined_call_operand.vmem [shape: bf16[16,8], index: 3, kind: input, shape index: {}]
  %s4 = inlined_call_operand.vmem [shape: f32[1,8], index: 4, kind: input, shape index: {}]
  %s5 = inlined_call_operand.vmem [shape: bf16[8,128], index: 5, kind: input, shape index: {}]
  %s6 = inlined_call_operand.vmem [shape: f32[1,128], index: 6, kind: input, shape index: {}]
  %s7 = inlined_call_operand.hbm [shape: f32[8,128], index: 7, kind: output, shape index: {}]
  %s8 = sld [smem:[#allocation0]]
  $region38: #{tpu_custom_call.1} parent=0
    _
  %s10 = ssub.s32 1, %s8
  %s11 = scalar_select 0, %s10, %s8
  $region1: #{tpu_custom_call.1} parent=0
    #allocation2 [shape = 'u8[4096]{0}', space=vmem, size = 0x1000, scoped, tag = 'output window, operand 0, single buffered']
    #allocation3 [shape = 's32[1]{0}', space=sflag, size = 0x4, scoped, tag = 'scoped memory for tpu_custom_call.1']
    %12 = vsyncpa [#allocation3], 0
    // Predicated region
    $region2: #{tpu_custom_call.1} parent=1 // pred_check
      _
    $region3: #{tpu_custom_call.1} parent=1 // pred_check_branch
      %14 = sbr.rel (0) target = $region5
    $region4: #{tpu_custom_call.1} parent=1 // pred_region
      _
    $region5: #{tpu_custom_call.1} parent=1 // pred_fallthru
      _
    // Predicated region
    $region6: #{tpu_custom_call.1} parent=1 // pred_check
      _
    $region7: #{tpu_custom_call.1} parent=1 // pred_check_branch
      %16 = sbr.rel (0) target = $region9
    $region8: #{tpu_custom_call.1} parent=1 // pred_region
      _
    $region9: #{tpu_custom_call.1} parent=1 // pred_fallthru
      _
    // Predicated region
    $region10: #{tpu_custom_call.1} parent=1 // pred_check
      _
    $region11: #{tpu_custom_call.1} parent=1 // pred_check_branch
      %18 = sbr.rel (0) target = $region13
    $region12: #{tpu_custom_call.1} parent=1 // pred_region
      _
    $region13: #{tpu_custom_call.1} parent=1 // pred_fallthru
      _
    // Predicated region
    $region14: #{tpu_custom_call.1} parent=1 // pred_check
      _
    $region15: #{tpu_custom_call.1} parent=1 // pred_check_branch
      %20 = sbr.rel (0) target = $region17
    $region16: #{tpu_custom_call.1} parent=1 // pred_region
      _
    $region17: #{tpu_custom_call.1} parent=1 // pred_fallthru
      _
    // Predicated region
    $region18: #{tpu_custom_call.1} parent=1 // pred_check
      _
    $region19: #{tpu_custom_call.1} parent=1 // pred_check_branch
      %22 = sbr.rel (0) target = $region21
    $region20: #{tpu_custom_call.1} parent=1 // pred_region
      _
    $region21: #{tpu_custom_call.1} parent=1 // pred_fallthru
      _
    // Predicated region
    $region22: #{tpu_custom_call.1} parent=1 // pred_check
      _
    $region23: #{tpu_custom_call.1} parent=1 // pred_check_branch
      %24 = sbr.rel (0) target = $region25
    $region24: #{tpu_custom_call.1} parent=1 // pred_region
      _
    $region25: #{tpu_custom_call.1} parent=1 // pred_fallthru
      _
    // Predicated region
    $region26: #{tpu_custom_call.1} parent=1 // pred_check
      _
    $region27: #{tpu_custom_call.1} parent=1 // pred_check_branch
      %26 = sbr.rel (0) target = $region29
    $region28: #{tpu_custom_call.1} parent=1 // pred_region
      _
    $region29: #{tpu_custom_call.1} parent=1 // pred_fallthru
      _
    %v28 = vld [vmem:[%s0] sm:$0xf]
    %v29 = vld [vmem:[%s1] sm:$0xf]
    %v30 = vld [vmem:[%s1 + $0x4] sm:$0xf]
    %v31 = vld [vmem:[%s1 + $0x8] sm:$0xf]
    %v32 = vld [vmem:[%s1 + $0xc] sm:$0xf]
    %v33 = vld [vmem:[%s2] sm:$0x1]
    %v35 = vlaneseq
    %v36 = vshrl.u32 %v35, 7
    %v37 = vsub.s32 0, %v36
    %v38 = vrot.slane %v33, %v37
    %v44 = vunpack.c.l.b16 %v29
    %v45 = vunpack.c.l.b16 %v30
    %v46 = vunpack.c.l.b16 %v31
    %v47 = vunpack.c.l.b16 %v32
    %v48 = vpack.c.b16 %v45, %v44
    %v49 = vpack.c.b16 %v47, %v46
    %vm52 = vcmask 261120
    %v54 = vsel %vm52, %v28, 0
    %56 = vmatprep.subr.bf16.mxu0 0
    %57 = vmatpush1.bf16.msra.mxu0 %v48
    %58 = vmatprep.subr.bf16.mxu0 0
    %59 = vmatpush1.bf16.msra.mxu0 %v49
    %60 = vmatprep.subr.bf16.mxu0 0
    %61 = vmatpush1.bf16.msra.mxu0 0
    %62 = vmatprep.subr.bf16.mxu0 0
    %63 = vmatpush1.bf16.msra.mxu0 0
    %64 = vmatprep.subr.bf16.mxu0 0
    %65 = vmatpush1.bf16.msra.mxu0 0
    %66 = vmatprep.subr.bf16.mxu0 0
    %67 = vmatpush1.bf16.msra.mxu0 0
    %68 = vmatprep.subr.bf16.mxu0 0
    %69 = vmatpush1.bf16.msra.mxu0 0
    %70 = vmatprep.subr.bf16.mxu0 0
    %71 = vmatpush1.bf16.msra.mxu0 0
    %72 = vmatprep.subr.bf16.mxu0 0
    %73 = vmatpush1.bf16.msra.mxu0 0
    %74 = vmatprep.subr.bf16.mxu0 0
    %75 = vmatpush1.bf16.msra.mxu0 0
    %76 = vmatprep.subr.bf16.mxu0 0
    %77 = vmatpush1.bf16.msra.mxu0 0
    %78 = vmatprep.subr.bf16.mxu0 0
    %79 = vmatpush1.bf16.msra.mxu0 0
    %80 = vmatprep.subr.bf16.mxu0 0
    %81 = vmatpush1.bf16.msra.mxu0 0
    %82 = vmatprep.subr.bf16.mxu0 0
    %83 = vmatpush1.bf16.msra.mxu0 0
    %84 = vmatprep.subr.bf16.mxu0 0
    %85 = vmatpush1.bf16.msra.mxu0 0
    %86 = vmatprep.subr.bf16.mxu0 0
    %87 = vmatpush1.bf16.msra.mxu0 0
    %88 = vmatprep.mubr.bf16.mxu0 0
    %89 = vmatmul.mubr.bf16.gmra.mrb[0].mxu0 %v54
    %v90 = vpop.f32.mrb[0].mxu0
    %v91 = vadd.f32 %v38, %v90
    %v92 = vpop.f32.mrb[0].mxu0
    %v93 = vpop.f32.mrb[0].mxu0
    %v94 = vpop.f32.mrb[0].mxu0
    %95 = vdwg.mxu0
    %v96 = vmax.f32 %v91, 0.0
    %v97 = vpack.c.bf16 %v96, %v96
    %v98 = vld [vmem:[%s3] sm:$0xf]
    %v99 = vld [vmem:[%s3 + $0x4] sm:$0xf]
    %v100 = vld [vmem:[%s4] sm:$0x1]
    %v102 = vlaneseq
    %v103 = vshrl.u32 %v102, 7
    %v104 = vsub.s32 0, %v103
    %v105 = vrot.slane %v100, %v104
    %v109 = vunpack.c.l.b16 %v98
    %v110 = vunpack.c.l.b16 %v99
    %v111 = vpack.c.b16 %v110, %v109
    %vm113 = vcmask 130048
    %v115 = vsel %vm113, %v97, 0
    %117 = vmatprep.subr.bf16.mxu0 0
    %118 = vmatpush1.bf16.msra.mxu0 %v111
    %119 = vmatprep.subr.bf16.mxu0 0
    %120 = vmatpush1.bf16.msra.mxu0 0
    %121 = vmatprep.subr.bf16.mxu0 0
    %122 = vmatpush1.bf16.msra.mxu0 0
    %123 = vmatprep.subr.bf16.mxu0 0
    %124 = vmatpush1.bf16.msra.mxu0 0
    %125 = vmatprep.subr.bf16.mxu0 0
    %126 = vmatpush1.bf16.msra.mxu0 0
    %127 = vmatprep.subr.bf16.mxu0 0
    %128 = vmatpush1.bf16.msra.mxu0 0
    %129 = vmatprep.subr.bf16.mxu0 0
    %130 = vmatpush1.bf16.msra.mxu0 0
    %131 = vmatprep.subr.bf16.mxu0 0
    %132 = vmatpush1.bf16.msra.mxu0 0
    %133 = vmatprep.subr.bf16.mxu0 0
    %134 = vmatpush1.bf16.msra.mxu0 0
    %135 = vmatprep.subr.bf16.mxu0 0
    %136 = vmatpush1.bf16.msra.mxu0 0
    %137 = vmatprep.subr.bf16.mxu0 0
    %138 = vmatpush1.bf16.msra.mxu0 0
    %139 = vmatprep.subr.bf16.mxu0 0
    %140 = vmatpush1.bf16.msra.mxu0 0
    %141 = vmatprep.subr.bf16.mxu0 0
    %142 = vmatpush1.bf16.msra.mxu0 0
    %143 = vmatprep.subr.bf16.mxu0 0
    %144 = vmatpush1.bf16.msra.mxu0 0
    %145 = vmatprep.subr.bf16.mxu0 0
    %146 = vmatpush1.bf16.msra.mxu0 0
    %147 = vmatprep.subr.bf16.mxu0 0
    %148 = vmatpush1.bf16.msra.mxu0 0
    %149 = vmatprep.mubr.bf16.mxu0 0
    %150 = vmatmul.mubr.bf16.gmra.mrb[0].mxu0 %v115
    %v151 = vpop.f32.mrb[0].mxu0
    %v152 = vadd.f32 %v105, %v151
    %v153 = vpop.f32.mrb[0].mxu0
    %v154 = vpop.f32.mrb[0].mxu0
    %v155 = vpop.f32.mrb[0].mxu0
    %156 = vdwg.mxu0
    %v157 = vmax.f32 %v152, 0.0
    %v158 = vpack.c.bf16 %v157, %v157
    %v159 = vld [vmem:[%s5] sm:$0xf]
    %v160 = vld [vmem:[%s6] sm:$0x1]
    %v162 = vlaneseq
    %v163 = vshrl.u32 %v162, 7
    %v164 = vsub.s32 0, %v163
    %v165 = vrot.slane %v160, %v164
    %vm167 = vcmask 64512
    %v169 = vsel %vm167, %v158, 0
    %vm171 = vcmask 1043456
    %v173 = vsel %vm171, %v159, 0
    %175 = vmatprep.subr.bf16.mxu0 0
    %176 = vmatpush1.bf16.msra.mxu0 %v173
    %177 = vmatprep.subr.bf16.mxu0 0
    %178 = vmatpush1.bf16.msra.mxu0 0
    %179 = vmatprep.subr.bf16.mxu0 0
    %180 = vmatpush1.bf16.msra.mxu0 0
    %181 = vmatprep.subr.bf16.mxu0 0
    %182 = vmatpush1.bf16.msra.mxu0 0
    %183 = vmatprep.subr.bf16.mxu0 0
    %184 = vmatpush1.bf16.msra.mxu0 0
    %185 = vmatprep.subr.bf16.mxu0 0
    %186 = vmatpush1.bf16.msra.mxu0 0
    %187 = vmatprep.subr.bf16.mxu0 0
    %188 = vmatpush1.bf16.msra.mxu0 0
    %189 = vmatprep.subr.bf16.mxu0 0
    %190 = vmatpush1.bf16.msra.mxu0 0
    %191 = vmatprep.subr.bf16.mxu0 0
    %192 = vmatpush1.bf16.msra.mxu0 0
    %193 = vmatprep.subr.bf16.mxu0 0
    %194 = vmatpush1.bf16.msra.mxu0 0
    %195 = vmatprep.subr.bf16.mxu0 0
    %196 = vmatpush1.bf16.msra.mxu0 0
    %197 = vmatprep.subr.bf16.mxu0 0
    %198 = vmatpush1.bf16.msra.mxu0 0
    %199 = vmatprep.subr.bf16.mxu0 0
    %200 = vmatpush1.bf16.msra.mxu0 0
    %201 = vmatprep.subr.bf16.mxu0 0
    %202 = vmatpush1.bf16.msra.mxu0 0
    %203 = vmatprep.subr.bf16.mxu0 0
    %204 = vmatpush1.bf16.msra.mxu0 0
    %205 = vmatprep.subr.bf16.mxu0 0
    %206 = vmatpush1.bf16.msra.mxu0 0
    %207 = vmatprep.mubr.bf16.mxu0 0
    %208 = vmatmul.mubr.bf16.gmra.mrb[0].mxu0 %v169
    %v209 = vpop.f32.mrb[0].mxu0
    %v210 = vadd.f32 %v165, %v209
    %v211 = vpop.f32.mrb[0].mxu0
    %v212 = vpop.f32.mrb[0].mxu0
    %v213 = vpop.f32.mrb[0].mxu0
    %214 = vdwg.mxu0
    %v215 = vlaneseq
    %v216 = vand.u32 %v215, 127
    %vm217 = vcmp.lt.s32.totalorder %v216, 60
    %v218 = vsel %vm217, %v210, -1e+09
    %219 = vmax.xlane.f32.xlu0 %v218
    %v220 = vpop.xlane.xlu0 %219
    %v221 = vsub.f32 %v210, %v220
    %v222 = vmul.f32 %v221, 1.442695
    %v223 = vpow.pop %v222
    %v224 = vsel %vm217, %v223, 0.0
    %225 = vadd.xlane.f32.xlu0 %v224
    %v226 = vpop.xlane.xlu0 %225
    %v227 = vrcp.pop %v226
    %v228 = vmul.f32 1.0, %v227
    %v229 = vmul.f32 %v224, %v228
    %230 = vst [vmem:[#allocation2] sm:$0xff] %v229
    // Predicated region
    $region30: #{tpu_custom_call.1} parent=1 // pred_check
      _
    $region31: #{tpu_custom_call.1} parent=1 // pred_check_branch
      %232 = sbr.rel (0) target = $region33
    $region32: #{tpu_custom_call.1} parent=1 // pred_region
      %s234 = ssub.s32 128, 128
      %235 = vsyncadd [#allocation3], %s234
      %s237 = sshll.u32 [#allocation2], 4
      %s238 = int_to_ptr.vmem [resolvable:$true] %s237
      %240 = dma.vmem_to_hbm [thread:$0]  %s238, 128, %s7, [#allocation3]
    $region33: #{tpu_custom_call.1} parent=1 // pred_fallthru
      _
    // Predicated region
    $region34: #{tpu_custom_call.1} parent=1 // pred_check
      _
    $region35: #{tpu_custom_call.1} parent=1 // pred_check_branch
      %242 = sbr.rel (0) target = $region37
    $region36: #{tpu_custom_call.1} parent=1 // pred_region
      %243 = dma.done [#allocation3], 128
    $region37: #{tpu_custom_call.1} parent=1 // pred_fallthru
      _
    %244 = vsyncpa [#allocation3], 1

</llo_original>
